<compile_context>
chip_gen: v7x
topology: tpu7x:2x2x1
jax: 0.10.0
libtpu: 0.0.40
codegen_flags: <defaults>
</compile_context>

<pallas_src>
import jax
import jax.numpy as jnp
from jax.experimental import pallas as pl
from jax.experimental.pallas import tpu as pltpu


def _round_up(x, m):
    return ((x + m - 1) // m) * m


# --------------------------------------------------------------------------
# Fused matmul + bias + (residual) + (ReLU) + (log_softmax) kernel — hot path.
# --------------------------------------------------------------------------
def _make_mm_kernel(has_res, relu, log_softmax_n):
    def kernel(a_ref, w_ref, b_ref, *rest):
        if has_res:
            r_ref, o_ref, acc_ref = rest
        else:
            o_ref, acc_ref = rest
        k = pl.program_id(1)

        @pl.when(k == 0)
        def _():
            acc_ref[...] = jnp.zeros_like(acc_ref)

        acc_ref[...] += jnp.dot(a_ref[...], w_ref[...],
                                preferred_element_type=jnp.float32)

        @pl.when(k == pl.num_programs(1) - 1)
        def _():
            y = acc_ref[...] + b_ref[...]
            if has_res:
                y = y + r_ref[...]
            if relu:
                y = jnp.maximum(y, 0.0)
            if log_softmax_n is not None:
                # mask padded output columns, then log-softmax over the lane axis
                col = jax.lax.broadcasted_iota(jnp.int32, y.shape, 1)
                y = jnp.where(col < log_softmax_n, y, -jnp.inf)
                m = jnp.max(y, axis=-1, keepdims=True)
                z = y - m
                lse = jnp.log(jnp.sum(jnp.exp(z), axis=-1, keepdims=True))
                y = z - lse
            o_ref[...] = y

    return kernel


def _pick_tn(Np):
    # Largest tile <= 512 lanes that still leaves >= 2 N tiles (so v7x's two
    # TensorCores can split the "parallel" N axis); single tile only for Np=128.
    for cand in (512, 384, 256, 128):
        if Np % cand == 0 and Np // cand >= 2:
            return cand
    return 128 if Np % 128 == 0 else Np


def _pick_tk(Kp):
    # Single K pass for small/medium K; otherwise the largest multiple of 128
    # <= 2048 dividing Kp (keeps the double-buffered bf16 W block <= ~4 MB,
    # well inside default scoped VMEM on v5e/v6e/v7x).
    if Kp <= 2304:
        return Kp
    best = 128
    for t in range(256, 2048 + 1, 128):
        if Kp % t == 0:
            best = t
    return best


def fused_matmul(a, w_p, b_p, residual=None, relu=False, log_softmax_n=None):
    """epilogue((A @ Wp) + b [+ residual]).

    A: (M, K) activations (any float dtype, cast to bf16 here).
    Wp: (Kp, Np) bf16, pre-transposed / BN-folded / zero-padded at pack time.
    b_p: (1, Np) f32 bias.  Returns padded (Mp, Np) f32; caller slices.
    """
    M, K = a.shape
    Kp, Np = w_p.shape
    Mp = max(16, _round_up(M, 16))          # bf16 sublane packing

    a_p = jnp.zeros((Mp, Kp), jnp.bfloat16).at[:M, :K].set(a.astype(jnp.bfloat16))

    tn = Np if log_softmax_n is not None else _pick_tn(Np)
    tk = _pick_tk(Kp)
    grid = (Np // tn, Kp // tk)

    inputs = [a_p, w_p, b_p]
    in_specs = [
        pl.BlockSpec((Mp, tk), lambda n, k: (0, k)),
        pl.BlockSpec((tk, tn), lambda n, k: (k, n)),
        pl.BlockSpec((1, tn), lambda n, k: (0, n)),
    ]
    has_res = residual is not None
    if has_res:
        Nr = residual.shape[1]
        r_p = jnp.zeros((Mp, Np), jnp.float32).at[:M, :Nr].set(
            residual.astype(jnp.float32))
        inputs.append(r_p)
        in_specs.append(pl.BlockSpec((Mp, tn), lambda n, k: (0, n)))

    out = pl.pallas_call(
        _make_mm_kernel(has_res, relu, log_softmax_n),
        out_shape=jax.ShapeDtypeStruct((Mp, Np), jnp.float32),
        grid_spec=pltpu.PrefetchScalarGridSpec(
            num_scalar_prefetch=0,
            grid=grid,
            in_specs=in_specs,
            out_specs=pl.BlockSpec((Mp, tn), lambda n, k: (0, n)),
            scratch_shapes=[pltpu.VMEM((Mp, tn), jnp.float32)],
        ),
        compiler_params=pltpu.CompilerParams(
            dimension_semantics=("parallel", "arbitrary"),
            vmem_limit_bytes=32 * 1024 * 1024),
    )(*inputs)
    return out


# --------------------------------------------------------------------------
# Conv2d = im2col (JAX glue, tiny activations) + fused_matmul (Pallas)
# --------------------------------------------------------------------------
def _im2col(x, kh, kw, sh, sw, ph, pw):
    if ph or pw:
        x = jnp.pad(x, ((0, 0), (ph, ph), (pw, pw), (0, 0)))
    N, H, W, C = x.shape
    Ho = (H - kh) // sh + 1
    Wo = (W - kw) // sw + 1
    cols = []
    for i in range(kh):
        for j in range(kw):
            cols.append(x[:, i:i + sh * (Ho - 1) + 1:sh,
                          j:j + sw * (Wo - 1) + 1:sw, :])
    patches = jnp.stack(cols, axis=3)             # (N, Ho, Wo, kh*kw, C)
    return patches.reshape(N * Ho * Wo, kh * kw * C), (N, Ho, Wo)


def conv2d(x, packed, stride, padding, residual=None, relu=False):
    kh, kw = packed["kh"], packed["kw"]
    cout = packed["n"]
    a, (N, Ho, Wo) = _im2col(x, kh, kw, stride[0], stride[1],
                             padding[0], padding[1])
    M = N * Ho * Wo
    res_flat = residual.reshape(M, cout) if residual is not None else None
    y = fused_matmul(a, packed["w"], packed["b"], residual=res_flat, relu=relu)
    return y[:M, :cout].reshape(N, Ho, Wo, cout)


def maxpool3x3(x):
    # MaxPool2d(kernel_size=(3,3), stride=(1,1)) — plain JAX on purpose: the
    # tensor is <100 KB; a standalone pallas_call costs more than the compute.
    N, H, W, C = x.shape
    Ho, Wo = H - 2, W - 2
    m = x[:, 0:Ho, 0:Wo, :]
    for i in range(3):
        for j in range(3):
            if i == 0 and j == 0:
                continue
            m = jnp.maximum(m, x[:, i:i + Ho, j:j + Wo, :])
    return m


# --------------------------------------------------------------------------
# One-time weight packing (transpose + BN fold + pad + bf16 cast)
# --------------------------------------------------------------------------
def _pack_matrix(wmat, bias):
    K, N = wmat.shape
    Kp, Np = _round_up(K, 128), _round_up(N, 128)
    w_p = jnp.zeros((Kp, Np), jnp.bfloat16).at[:K, :N].set(
        wmat.astype(jnp.bfloat16))
    b_p = jnp.zeros((1, Np), jnp.float32).at[0, :N].set(
        bias.astype(jnp.float32))
    return w_p, b_p


def pack_conv(conv, bn=None):
    w, b = conv["w"], conv["b"]                   # PyTorch layout (Cout,Cin,kh,kw)
    Cout, Cin, kh, kw = w.shape
    wmat = jnp.transpose(w, (2, 3, 1, 0)).reshape(kh * kw * Cin, Cout)
    if bn is not None:                            # fold BN (inference) into W / bias
        scale = bn["gamma"] / jnp.sqrt(bn["var"] + 1e-5)
        shift = bn["beta"] - bn["mean"] * scale
        wmat = wmat * scale[None, :]
        bias = b * scale + shift
    else:
        bias = b
    w_p, b_p = _pack_matrix(wmat, bias)
    return {"w": w_p, "b": b_p, "kh": kh, "kw": kw, "n": Cout}


def pack_linear(w, b):                            # PyTorch Linear (out, in)
    w_p, b_p = _pack_matrix(w.T, b)
    return {"w": w_p, "b": b_p, "n": w.shape[0]}


def pack_residual(p):
    return {
        "conv1": pack_conv(p["conv1"], p["bn1"]),
        "conv2": pack_conv(p["conv2"], p["bn2"]),
        "conv3": pack_conv(p["conv3"]) if p["conv3"] is not None else None,
        "strides": p["strides"],
    }


def pack_params(params):
    packed = {"b1": pack_conv(params["b1_conv"], params["b1_bn"])}
    for name in ("b2", "b3", "b4", "b5", "b6", "b7"):
        packed[name] = pack_residual(params[name])
    packed["fc1"] = pack_linear(params["fc1_w"], params["fc1_b"])
    packed["fc2"] = pack_linear(params["fc2_w"], params["fc2_b"])
    return packed


# --------------------------------------------------------------------------
# Parameter initialization (deterministic, shapes from the PyTorch __init__)
# --------------------------------------------------------------------------
def _conv_params(key, cout, cin, kh, kw):
    k1, k2 = jax.random.split(key)
    fan_in = cin * kh * kw
    return {
        "w": jax.random.normal(k1, (cout, cin, kh, kw), jnp.float32)
             * jnp.sqrt(2.0 / fan_in),
        "b": 0.01 * jax.random.normal(k2, (cout,), jnp.float32),
    }


def _bn_params(key, c):
    k1, k2, k3, k4 = jax.random.split(key, 4)
    return {
        "gamma": 1.0 + 0.1 * jax.random.normal(k1, (c,), jnp.float32),
        "beta": 0.1 * jax.random.normal(k2, (c,), jnp.float32),
        "mean": 0.1 * jax.random.normal(k3, (c,), jnp.float32),
        "var": 1.0 + 0.1 * jax.random.uniform(k4, (c,), jnp.float32),
    }


def _residual_params(key, cin, cout, use_1x1, strides):
    keys = jax.random.split(key, 5)
    return {
        "conv1": _conv_params(keys[0], cout, cin, 3, 3),
        "bn1": _bn_params(keys[1], cout),
        "conv2": _conv_params(keys[2], cout, cout, 3, 3),
        "bn2": _bn_params(keys[3], cout),
        "conv3": _conv_params(keys[4], cout, cin, 1, 1) if use_1x1 else None,
        "strides": strides,
    }


def init_params(key):
    keys = jax.random.split(key, 12)
    return {
        "b1_conv": _conv_params(keys[0], 64, 1, 1, 50),
        "b1_bn": _bn_params(keys[1], 64),
        "b2": _residual_params(keys[2], 64, 64, False, 1),
        "b3": _residual_params(keys[3], 64, 128, True, 2),
        "b4": _residual_params(keys[4], 128, 256, True, 2),
        "b5": _residual_params(keys[5], 256, 512, True, 2),
        "b6": _residual_params(keys[6], 512, 1024, True, 2),
        "b7": _residual_params(keys[7], 1024, 2048, True, 2),
        "fc1_w": jax.random.normal(keys[8], (1024, 2048), jnp.float32)
                 * jnp.sqrt(1.0 / 2048),
        "fc1_b": 0.01 * jax.random.normal(keys[9], (1024,), jnp.float32),
        "fc2_w": jax.random.normal(keys[10], (5, 1024), jnp.float32)
                 * jnp.sqrt(1.0 / 1024),
        "fc2_b": 0.01 * jax.random.normal(keys[11], (5,), jnp.float32),
    }


# --------------------------------------------------------------------------
# Forward pass (mirrors d2lresnet.forward, inference mode)
# --------------------------------------------------------------------------
def residual_forward(x, p):
    s = p["strides"]
    y = conv2d(x, p["conv1"], (s, s), (1, 1), relu=True)          # conv1+BN1+ReLU
    if p["conv3"] is not None:
        skip = conv2d(x, p["conv3"], (s, s), (0, 0))               # 1x1 shortcut
    else:
        skip = x
    return conv2d(y, p["conv2"], (1, 1), (1, 1),                   # conv2+BN2+add+ReLU
                  residual=skip, relu=True)


def d2lresnet_forward(x, pp):
    # x: (N, H, W) — add_channel_dimm() makes it single-channel (NHWC, C=1)
    x = x[..., None]
    x = conv2d(x, pp["b1"], (1, 1), (0, 0), relu=True)             # Conv(1,50)+BN+ReLU
    x = maxpool3x3(x)                                              # MaxPool2d(3, stride=1)
    for name in ("b2", "b3", "b4", "b5", "b6", "b7"):
        x = residual_forward(x, pp[name])
    x = jnp.mean(x, axis=(1, 2))                                   # AdaptiveAvgPool2d((1,1)) + squeeze_all
    # TODO(synk): nn.Dropout(p=0.5) is identity in eval mode; training-mode RNG mask not implemented.
    B = x.shape[0]
    x = fused_matmul(x, pp["fc1"]["w"], pp["fc1"]["b"])[:B, :pp["fc1"]["n"]]
    y = fused_matmul(x, pp["fc2"]["w"], pp["fc2"]["b"],
                     log_softmax_n=pp["fc2"]["n"])[:B, :pp["fc2"]["n"]]
    return y


if __name__ == "__main__":
    key = jax.random.PRNGKey(0)
    pkey, xkey = jax.random.split(key)
    params = init_params(pkey)
    packed = pack_params(params)      # one-time: transpose + BN fold + pad + bf16
    jax.block_until_ready(jax.tree_util.tree_leaves(packed))
    # small gesture-like input: batch=2, 12 sensor rows, 60 time samples (>= 50 for the (1,50) conv)
    x = jax.random.normal(xkey, (2, 12, 60), jnp.float32)
    y = d2lresnet_forward(x, packed)
    jax.block_until_ready(y)
    assert y.shape == (2, 5) and bool(jnp.all(jnp.isfinite(y)))
    print("KERNEL_OK")
</pallas_src>

<mosaic_0001>
module attributes {stable_mosaic.version = 11 : i64} {
  func.func @kernel(%arg0: i32, %arg1: i32, %arg2: memref<272x128xbf16, #tpu.memory_space<vmem>>, %arg3: memref<128x128xbf16, #tpu.memory_space<vmem>>, %arg4: memref<1x128xf32, #tpu.memory_space<vmem>>, %arg5: memref<272x128xf32, #tpu.memory_space<vmem>>, %arg6: memref<272x128xf32, #tpu.memory_space<vmem>>) attributes {dimension_semantics = [#tpu.dimension_semantics<parallel>, #tpu.dimension_semantics<arbitrary>], iteration_bounds = array<i64: 1, 1>, scalar_prefetch = 0 : i64, scratch_operands = 1 : i64, tpu.core_type = #tpu.core_type<tc>, window_params = [{transform_indices = @transform_0, window_bounds = array<i64: 272, 128>}, {transform_indices = @transform_1, window_bounds = array<i64: 128, 128>}, {transform_indices = @transform_2, window_bounds = array<i64: 1, 128>}, {transform_indices = @transform_3, window_bounds = array<i64: 272, 128>}]} {
    %c0_i32 = arith.constant 0 : i32
    %0 = arith.cmpi eq, %arg1, %c0_i32 : i32
    %1 = arith.extui %0 : i1 to i32
    %c0_i32_0 = arith.constant 0 : i32
    %2 = arith.cmpi ne, %1, %c0_i32_0 : i32
    scf.if %2 {
      %cst_10 = arith.constant 0.000000e+00 : f32
      %12 = vector.broadcast %cst_10 : f32 to vector<272x128xf32>
      %c0_11 = arith.constant 0 : index
      %c0_12 = arith.constant 0 : index
      %13 = vector.load %arg6[%c0_11, %c0_12] : memref<272x128xf32, #tpu.memory_space<vmem>>, vector<272x128xf32>
      tpu.vector_store %arg6[%c0_11, %c0_12], %12 {strides = array<i32>} : memref<272x128xf32, #tpu.memory_space<vmem>>, vector<272x128xf32>,
    } else {
    }
    %c0 = arith.constant 0 : index
    %c0_1 = arith.constant 0 : index
    %3 = vector.load %arg6[%c0, %c0_1] : memref<272x128xf32, #tpu.memory_space<vmem>>, vector<272x128xf32>
    %c0_2 = arith.constant 0 : index
    %c0_3 = arith.constant 0 : index
    %4 = vector.load %arg2[%c0_2, %c0_3] : memref<272x128xbf16, #tpu.memory_space<vmem>>, vector<272x128xbf16>
    %c0_4 = arith.constant 0 : index
    %c0_5 = arith.constant 0 : index
    %5 = vector.load %arg3[%c0_4, %c0_5] : memref<128x128xbf16, #tpu.memory_space<vmem>>, vector<128x128xbf16>
    %cst = arith.constant dense<0.000000e+00> : vector<272x128xf32>
    %6 = tpu.matmul %4, %5, %cst {dimension_numbers = #tpu.dot_dimension_numbers<[1], [0], [0], [1], [0, 0, 1, 1], [], []>} : vector<272x128xbf16>, vector<128x128xbf16>, vector<272x128xf32> -> vector<272x128xf32>
    %7 = arith.addf %3, %6 : vector<272x128xf32>
    %c0_6 = arith.constant 0 : index
    %c0_7 = arith.constant 0 : index
    %8 = vector.load %arg6[%c0_6, %c0_7] : memref<272x128xf32, #tpu.memory_space<vmem>>, vector<272x128xf32>
    tpu.vector_store %arg6[%c0_6, %c0_7], %7 {strides = array<i32>} : memref<272x128xf32, #tpu.memory_space<vmem>>, vector<272x128xf32>,
    %c0_i32_8 = arith.constant 0 : i32
    %9 = arith.cmpi eq, %arg1, %c0_i32_8 : i32
    %10 = arith.extui %9 : i1 to i32
    %c0_i32_9 = arith.constant 0 : i32
    %11 = arith.cmpi ne, %10, %c0_i32_9 : i32
    scf.if %11 {
      %c0_10 = arith.constant 0 : index
      %c0_11 = arith.constant 0 : index
      %12 = vector.load %arg6[%c0_10, %c0_11] : memref<272x128xf32, #tpu.memory_space<vmem>>, vector<272x128xf32>
      %c0_12 = arith.constant 0 : index
      %c0_13 = arith.constant 0 : index
      %13 = vector.load %arg4[%c0_12, %c0_13] : memref<1x128xf32, #tpu.memory_space<vmem>>, vector<1x128xf32>
      %14 = vector.broadcast %13 : vector<1x128xf32> to vector<272x128xf32>
      %15 = arith.addf %12, %14 : vector<272x128xf32>
      %cst_14 = arith.constant 0.000000e+00 : f32
      %16 = vector.broadcast %cst_14 : f32 to vector<272x128xf32>
      %17 = arith.maximumf %15, %16 : vector<272x128xf32>
      %c0_15 = arith.constant 0 : index
      %c0_16 = arith.constant 0 : index
      %18 = vector.load %arg5[%c0_15, %c0_16] : memref<272x128xf32, #tpu.memory_space<vmem>>, vector<272x128xf32>
      tpu.vector_store %arg5[%c0_15, %c0_16], %17 {strides = array<i32>} : memref<272x128xf32, #tpu.memory_space<vmem>>, vector<272x128xf32>,
    } else {
    }
    return
  }
  func.func @transform_0(%arg0: i32, %arg1: i32) -> (i32, i32) {
    %c0_i32 = arith.constant 0 : i32
    %c0_i32_0 = arith.constant 0 : i32
    return %c0_i32, %arg1 : i32, i32
  }
  func.func @transform_1(%arg0: i32, %arg1: i32) -> (i32, i32) {
    %c0_i32 = arith.constant 0 : i32
    return %arg1, %arg0 : i32, i32
  }
  func.func @transform_2(%arg0: i32, %arg1: i32) -> (i32, i32) {
    %c0_i32 = arith.constant 0 : i32
    %c0_i32_0 = arith.constant 0 : i32
    return %c0_i32, %arg0 : i32, i32
  }
  func.func @transform_3(%arg0: i32, %arg1: i32) -> (i32, i32) {
    %c0_i32 = arith.constant 0 : i32
    %c0_i32_0 = arith.constant 0 : i32
    return %c0_i32, %arg0 : i32, i32
  }
}

</mosaic_0001>

<llo_original>
// kernel: tpu_custom_call.1
$region0: #{tpu_custom_call.1}
  #allocation0 [shape = 'u32[]', space=smem, size = 0x4, offset = 0x4, fixed_abs, tag = 'smem constant byte address 0x4 - core index']
  #allocation1 [shape = 'u32[144,128]{1,0:T(1,128)}', space=vmem, size = 0x12000, scoped, tag = 'internal scratch']
  #allocation2 [shape = 'f32[272,128]{1,0:T(8,128)}', space=vmem, size = 0x22000, scoped, tag = 'scratch operand']
  %s0 = inlined_call_operand.hbm [shape: bf16[272,128], index: 0, kind: input, shape index: {}]
  %s1 = inlined_call_operand.hbm [shape: bf16[128,128], index: 1, kind: input, shape index: {}]
  %s2 = inlined_call_operand.vmem [shape: f32[1,128], index: 2, kind: input, shape index: {}]
  %s3 = inlined_call_operand.hbm [shape: f32[272,128], index: 3, kind: output, shape index: {}]
  %s4 = sld [smem:[#allocation0]]
  $region38: #{tpu_custom_call.1} parent=0
    _
  %s6 = ssub.s32 1, %s4
  %s7 = scalar_select 0, %s6, %s4
  $region1: #{tpu_custom_call.1} parent=0
    #allocation3 [shape = 'u8[69632]{0}', space=vmem, size = 0x11000, scoped, tag = 'input window, operand 0, single buffered']
    #allocation4 [shape = 's32[1]{0}', space=sflag, size = 0x4, scoped, tag = 'scoped memory for tpu_custom_call.1']
    #allocation5 [shape = 's32[1]{0}', space=sflag, size = 0x4, scoped, tag = 'scoped memory for tpu_custom_call.1']
    #allocation6 [shape = 'u8[32768]{0}', space=vmem, size = 0x8000, scoped, tag = 'input window, operand 1, single buffered']
    #allocation7 [shape = 's32[1]{0}', space=sflag, size = 0x4, scoped, tag = 'scoped memory for tpu_custom_call.1']
    #allocation8 [shape = 'u8[139264]{0}', space=vmem, size = 0x22000, scoped, tag = 'output window, operand 0, single buffered']
    %8 = vsyncpa [#allocation4], 0
    %9 = vsyncpa [#allocation7], 0
    %10 = vsyncpa [#allocation5], 0
    // Predicated region
    $region2: #{tpu_custom_call.1} parent=1 // pred_check
      _
    $region3: #{tpu_custom_call.1} parent=1 // pred_check_branch
      %12 = sbr.rel (0) target = $region5
    $region4: #{tpu_custom_call.1} parent=1 // pred_region
      %s14 = ssub.s32 2176, 2176
      %15 = vsyncadd [#allocation4], %s14
      %s16 = sshll.u32 [#allocation3], 4
      %s17 = int_to_ptr.vmem [resolvable:$true] %s16
      %22 = dma.hbm_to_vmem [thread:$0]  %s0, 2176, %s17, [#allocation4], 64, 64, 4
    $region5: #{tpu_custom_call.1} parent=1 // pred_fallthru
      _
    // Predicated region
    $region6: #{tpu_custom_call.1} parent=1 // pred_check
      _
    $region7: #{tpu_custom_call.1} parent=1 // pred_check_branch
      %24 = sbr.rel (0) target = $region9
    $region8: #{tpu_custom_call.1} parent=1 // pred_region
      %s26 = ssub.s32 1024, 1024
      %27 = vsyncadd [#allocation7], %s26
      %s28 = sshll.u32 [#allocation6], 4
      %s29 = int_to_ptr.vmem [resolvable:$true] %s28
      %34 = dma.hbm_to_vmem [thread:$0]  %s1, 1024, %s29, [#allocation7], 64, 64, 4
    $region9: #{tpu_custom_call.1} parent=1 // pred_fallthru
      _
    // Predicated region
    $region10: #{tpu_custom_call.1} parent=1 // pred_check
      _
    $region11: #{tpu_custom_call.1} parent=1 // pred_check_branch
      %36 = sbr.rel (0) target = $region13
    $region12: #{tpu_custom_call.1} parent=1 // pred_region
      _
    $region13: #{tpu_custom_call.1} parent=1 // pred_fallthru
      _
    // Predicated region
    $region14: #{tpu_custom_call.1} parent=1 // pred_check
      _
    $region15: #{tpu_custom_call.1} parent=1 // pred_check_branch
      %38 = sbr.rel (0) target = $region17
    $region16: #{tpu_custom_call.1} parent=1 // pred_region
      %39 = dma.done [#allocation4], 2176
    $region17: #{tpu_custom_call.1} parent=1 // pred_fallthru
      _
    // Predicated region
    $region18: #{tpu_custom_call.1} parent=1 // pred_check
      _
    $region19: #{tpu_custom_call.1} parent=1 // pred_check_branch
      %41 = sbr.rel (0) target = $region21
    $region20: #{tpu_custom_call.1} parent=1 // pred_region
      %42 = dma.done [#allocation7], 1024
    $region21: #{tpu_custom_call.1} parent=1 // pred_fallthru
      _
    %p44 = scmp.eq.s32.totalorder 0, 0
    // Predicated region
    $region22: #{tpu_custom_call.1} parent=1 // pred_check
      %p45 = pneg %p44
    $region23: #{tpu_custom_call.1} parent=1 // pred_check_branch
      %47 = sbr.rel (%p45) target = $region25
    $region24: #{tpu_custom_call.1} parent=1 // pred_region
      %48 = vst [vmem:[#allocation2] sm:$0xff] 0.0
      %49 = vst [vmem:[#allocation2 + $0x8] sm:$0xff] 0.0
      %50 = vst [vmem:[#allocation2 + $0x10] sm:$0xff] 0.0
      %51 = vst [vmem:[#allocation2 + $0x18] sm:$0xff] 0.0
      %52 = vst [vmem:[#allocation2 + $0x20] sm:$0xff] 0.0
      %53 = vst [vmem:[#allocation2 + $0x28] sm:$0xff] 0.0
      %54 = vst [vmem:[#allocation2 + $0x30] sm:$0xff] 0.0
      %55 = vst [vmem:[#allocation2 + $0x38] sm:$0xff] 0.0
      %56 = vst [vmem:[#allocation2 + $0x40] sm:$0xff] 0.0
      %57 = vst [vmem:[#allocation2 + $0x48] sm:$0xff] 0.0
      %58 = vst [vmem:[#allocation2 + $0x50] sm:$0xff] 0.0
      %59 = vst [vmem:[#allocation2 + $0x58] sm:$0xff] 0.0
      %60 = vst [vmem:[#allocation2 + $0x60] sm:$0xff] 0.0
      %61 = vst [vmem:[#allocation2 + $0x68] sm:$0xff] 0.0
      %62 = vst [vmem:[#allocation2 + $0x70] sm:$0xff] 0.0
      %63 = vst [vmem:[#allocation2 + $0x78] sm:$0xff] 0.0
      %64 = vst [vmem:[#allocation2 + $0x80] sm:$0xff] 0.0
      %65 = vst [vmem:[#allocation2 + $0x88] sm:$0xff] 0.0
      %66 = vst [vmem:[#allocation2 + $0x90] sm:$0xff] 0.0
      %67 = vst [vmem:[#allocation2 + $0x98] sm:$0xff] 0.0
      %68 = vst [vmem:[#allocation2 + $0xa0] sm:$0xff] 0.0
      %69 = vst [vmem:[#allocation2 + $0xa8] sm:$0xff] 0.0
      %70 = vst [vmem:[#allocation2 + $0xb0] sm:$0xff] 0.0
      %71 = vst [vmem:[#allocation2 + $0xb8] sm:$0xff] 0.0
      %72 = vst [vmem:[#allocation2 + $0xc0] sm:$0xff] 0.0
      %73 = vst [vmem:[#allocation2 + $0xc8] sm:$0xff] 0.0
      %74 = vst [vmem:[#allocation2 + $0xd0] sm:$0xff] 0.0
      %75 = vst [vmem:[#allocation2 + $0xd8] sm:$0xff] 0.0
      %76 = vst [vmem:[#allocation2 + $0xe0] sm:$0xff] 0.0
      %77 = vst [vmem:[#allocation2 + $0xe8] sm:$0xff] 0.0
      %78 = vst [vmem:[#allocation2 + $0xf0] sm:$0xff] 0.0
      %79 = vst [vmem:[#allocation2 + $0xf8] sm:$0xff] 0.0
      %80 = vst [vmem:[#allocation2 + $0x100] sm:$0xff] 0.0
      %81 = vst [vmem:[#allocation2 + $0x108] sm:$0xff] 0.0
    $region25: #{tpu_custom_call.1} parent=1 // pred_fallthru
      _
    %v82 = vld [vmem:[#allocation2] sm:$0xff]
    %v83 = vld [vmem:[#allocation2 + $0x8] sm:$0xff]
    %v84 = vld [vmem:[#allocation2 + $0x10] sm:$0xff]
    %v85 = vld [vmem:[#allocation2 + $0x18] sm:$0xff]
    %v86 = vld [vmem:[#allocation2 + $0x20] sm:$0xff]
    %v87 = vld [vmem:[#allocation2 + $0x28] sm:$0xff]
    %v88 = vld [vmem:[#allocation2 + $0x30] sm:$0xff]
    %v89 = vld [vmem:[#allocation2 + $0x38] sm:$0xff]
    %v90 = vld [vmem:[#allocation2 + $0x40] sm:$0xff]
    %v91 = vld [vmem:[#allocation2 + $0x48] sm:$0xff]
    %v92 = vld [vmem:[#allocation2 + $0x50] sm:$0xff]
    %v93 = vld [vmem:[#allocation2 + $0x58] sm:$0xff]
    %v94 = vld [vmem:[#allocation2 + $0x60] sm:$0xff]
    %v95 = vld [vmem:[#allocation2 + $0x68] sm:$0xff]
    %v96 = vld [vmem:[#allocation2 + $0x70] sm:$0xff]
    %v97 = vld [vmem:[#allocation2 + $0x78] sm:$0xff]
    %v98 = vld [vmem:[#allocation2 + $0x80] sm:$0xff]
    %v99 = vld [vmem:[#allocation2 + $0x88] sm:$0xff]
    %v100 = vld [vmem:[#allocation2 + $0x90] sm:$0xff]
    %v101 = vld [vmem:[#allocation2 + $0x98] sm:$0xff]
    %v102 = vld [vmem:[#allocation2 + $0xa0] sm:$0xff]
    %v103 = vld [vmem:[#allocation2 + $0xa8] sm:$0xff]
    %v104 = vld [vmem:[#allocation2 + $0xb0] sm:$0xff]
    %v105 = vld [vmem:[#allocation2 + $0xb8] sm:$0xff]
    %v106 = vld [vmem:[#allocation2 + $0xc0] sm:$0xff]
    %v107 = vld [vmem:[#allocation2 + $0xc8] sm:$0xff]
    %v108 = vld [vmem:[#allocation2 + $0xd0] sm:$0xff]
    %v109 = vld [vmem:[#allocation2 + $0xd8] sm:$0xff]
    %v110 = vld [vmem:[#allocation2 + $0xe0] sm:$0xff]
    %v111 = vld [vmem:[#allocation2 + $0xe8] sm:$0xff]
    %v112 = vld [vmem:[#allocation2 + $0xf0] sm:$0xff]
    %v113 = vld [vmem:[#allocation2 + $0xf8] sm:$0xff]
    %v114 = vld [vmem:[#allocation2 + $0x100] sm:$0xff]
    %v115 = vld [vmem:[#allocation2 + $0x108] sm:$0xff]
    %v116 = vld [vmem:[#allocation3] sm:$0xf]
    %v117 = vld [vmem:[#allocation3 + $0x4] sm:$0xf]
    %v118 = vld [vmem:[#allocation3 + $0x8] sm:$0xf]
    %v119 = vld [vmem:[#allocation3 + $0xc] sm:$0xf]
    %v120 = vld [vmem:[#allocation3 + $0x10] sm:$0xf]
    %v121 = vld [vmem:[#allocation3 + $0x14] sm:$0xf]
    %v122 = vld [vmem:[#allocation3 + $0x18] sm:$0xf]
    %v123 = vld [vmem:[#allocation3 + $0x1c] sm:$0xf]
    %v124 = vld [vmem:[#allocation3 + $0x20] sm:$0xf]
    %v125 = vld [vmem:[#allocation3 + $0x24] sm:$0xf]
    %v126 = vld [vmem:[#allocation3 + $0x28] sm:$0xf]
    %v127 = vld [vmem:[#allocation3 + $0x2c] sm:$0xf]
    %v128 = vld [vmem:[#allocation3 + $0x30] sm:$0xf]
    %v129 = vld [vmem:[#allocation3 + $0x34] sm:$0xf]
    %v130 = vld [vmem:[#allocation3 + $0x38] sm:$0xf]
    %v131 = vld [vmem:[#allocation3 + $0x3c] sm:$0xf]
    %v132 = vld [vmem:[#allocation3 + $0x40] sm:$0xf]
    %v133 = vld [vmem:[#allocation3 + $0x44] sm:$0xf]
    %v134 = vld [vmem:[#allocation3 + $0x48] sm:$0xf]
    %v135 = vld [vmem:[#allocation3 + $0x4c] sm:$0xf]
    %v136 = vld [vmem:[#allocation3 + $0x50] sm:$0xf]
    %v137 = vld [vmem:[#allocation3 + $0x54] sm:$0xf]
    %v138 = vld [vmem:[#allocation3 + $0x58] sm:$0xf]
    %v139 = vld [vmem:[#allocation3 + $0x5c] sm:$0xf]
    %v140 = vld [vmem:[#allocation3 + $0x60] sm:$0xf]
    %v141 = vld [vmem:[#allocation3 + $0x64] sm:$0xf]
    %v142 = vld [vmem:[#allocation3 + $0x68] sm:$0xf]
    %v143 = vld [vmem:[#allocation3 + $0x6c] sm:$0xf]
    %v144 = vld [vmem:[#allocation3 + $0x70] sm:$0xf]
    %v145 = vld [vmem:[#allocation3 + $0x74] sm:$0xf]
    %v146 = vld [vmem:[#allocation3 + $0x78] sm:$0xf]
    %v147 = vld [vmem:[#allocation3 + $0x7c] sm:$0xf]
    %v148 = vld [vmem:[#allocation3 + $0x80] sm:$0xf]
    %v149 = vld [vmem:[#allocation3 + $0x84] sm:$0xf]
    %v150 = vld [vmem:[#allocation6] sm:$0xf]
    %v151 = vld [vmem:[#allocation6 + $0x4] sm:$0xf]
    %v152 = vld [vmem:[#allocation6 + $0x8] sm:$0xf]
    %v153 = vld [vmem:[#allocation6 + $0xc] sm:$0xf]
    %v154 = vld [vmem:[#allocation6 + $0x10] sm:$0xf]
    %v155 = vld [vmem:[#allocation6 + $0x14] sm:$0xf]
    %v156 = vld [vmem:[#allocation6 + $0x18] sm:$0xf]
    %v157 = vld [vmem:[#allocation6 + $0x1c] sm:$0xf]
    %v158 = vld [vmem:[#allocation6 + $0x20] sm:$0xf]
    %v159 = vld [vmem:[#allocation6 + $0x24] sm:$0xf]
    %v160 = vld [vmem:[#allocation6 + $0x28] sm:$0xf]
    %v161 = vld [vmem:[#allocation6 + $0x2c] sm:$0xf]
    %v162 = vld [vmem:[#allocation6 + $0x30] sm:$0xf]
    %v163 = vld [vmem:[#allocation6 + $0x34] sm:$0xf]
    %v164 = vld [vmem:[#allocation6 + $0x38] sm:$0xf]
    %v165 = vld [vmem:[#allocation6 + $0x3c] sm:$0xf]
    %v200 = vunpack.c.l.b16 %v116
    %v201 = vunpack.c.l.b16 %v117
    %v202 = vunpack.c.l.b16 %v118
    %v203 = vunpack.c.l.b16 %v119
    %v204 = vunpack.c.l.b16 %v120
    %v205 = vunpack.c.l.b16 %v121
    %v206 = vunpack.c.l.b16 %v122
    %v207 = vunpack.c.l.b16 %v123
    %v208 = vunpack.c.l.b16 %v124
    %v209 = vunpack.c.l.b16 %v125
    %v210 = vunpack.c.l.b16 %v126
    %v211 = vunpack.c.l.b16 %v127
    %v212 = vunpack.c.l.b16 %v128
    %v213 = vunpack.c.l.b16 %v129
    %v214 = vunpack.c.l.b16 %v130
    %v215 = vunpack.c.l.b16 %v131
    %v216 = vunpack.c.l.b16 %v132
    %v217 = vunpack.c.l.b16 %v133
    %v218 = vunpack.c.l.b16 %v134
    %v219 = vunpack.c.l.b16 %v135
    %v220 = vunpack.c.l.b16 %v136
    %v221 = vunpack.c.l.b16 %v137
    %v222 = vunpack.c.l.b16 %v138
    %v223 = vunpack.c.l.b16 %v139
    %v224 = vunpack.c.l.b16 %v140
    %v225 = vunpack.c.l.b16 %v141
    %v226 = vunpack.c.l.b16 %v142
    %v227 = vunpack.c.l.b16 %v143
    %v228 = vunpack.c.l.b16 %v144
    %v229 = vunpack.c.l.b16 %v145
    %v230 = vunpack.c.l.b16 %v146
    %v231 = vunpack.c.l.b16 %v147
    %v232 = vunpack.c.l.b16 %v148
    %v233 = vunpack.c.l.b16 %v149
    %v234 = vpack.c.b16 %v201, %v200
    %v235 = vpack.c.b16 %v203, %v202
    %v236 = vpack.c.b16 %v205, %v204
    %v237 = vpack.c.b16 %v207, %v206
    %v238 = vpack.c.b16 %v209, %v208
    %v239 = vpack.c.b16 %v211, %v210
    %v240 = vpack.c.b16 %v213, %v212
    %v241 = vpack.c.b16 %v215, %v214
    %v242 = vpack.c.b16 %v217, %v216
    %v243 = vpack.c.b16 %v219, %v218
    %v244 = vpack.c.b16 %v221, %v220
    %v245 = vpack.c.b16 %v223, %v222
    %v246 = vpack.c.b16 %v225, %v224
    %v247 = vpack.c.b16 %v227, %v226
    %v248 = vpack.c.b16 %v229, %v228
    %v249 = vpack.c.b16 %v231, %v230
    %v250 = vpack.c.b16 %v233, %v232
    %v284 = vunpack.c.l.b16 %v150
    %v285 = vunpack.c.l.b16 %v151
    %v286 = vunpack.c.l.b16 %v152
    %v287 = vunpack.c.l.b16 %v153
    %v288 = vunpack.c.l.b16 %v154
    %v289 = vunpack.c.l.b16 %v155
    %v290 = vunpack.c.l.b16 %v156
    %v291 = vunpack.c.l.b16 %v157
    %v292 = vunpack.c.l.b16 %v158
    %v293 = vunpack.c.l.b16 %v159
    %v294 = vunpack.c.l.b16 %v160
    %v295 = vunpack.c.l.b16 %v161
    %v296 = vunpack.c.l.b16 %v162
    %v297 = vunpack.c.l.b16 %v163
    %v298 = vunpack.c.l.b16 %v164
    %v299 = vunpack.c.l.b16 %v165
    %v300 = vpack.c.b16 %v285, %v284
    %v301 = vpack.c.b16 %v287, %v286
    %v302 = vpack.c.b16 %v289, %v288
    %v303 = vpack.c.b16 %v291, %v290
    %v304 = vpack.c.b16 %v293, %v292
    %v305 = vpack.c.b16 %v295, %v294
    %v306 = vpack.c.b16 %v297, %v296
    %v307 = vpack.c.b16 %v299, %v298
    %316 = vmatprep.subr.bf16.mxu0 0
    %317 = vmatpush1.bf16.msra.mxu0 %v300
    %318 = vmatprep.subr.bf16.mxu0 0
    %319 = vmatpush1.bf16.msra.mxu0 %v301
    %320 = vmatprep.subr.bf16.mxu0 0
    %321 = vmatpush1.bf16.msra.mxu0 %v302
    %322 = vmatprep.subr.bf16.mxu0 0
    %323 = vmatpush1.bf16.msra.mxu0 %v303
    %324 = vmatprep.subr.bf16.mxu0 0
    %325 = vmatpush1.bf16.msra.mxu0 %v304
    %326 = vmatprep.subr.bf16.mxu0 0
    %327 = vmatpush1.bf16.msra.mxu0 %v305
    %328 = vmatprep.subr.bf16.mxu0 0
    %329 = vmatpush1.bf16.msra.mxu0 %v306
    %330 = vmatprep.subr.bf16.mxu0 0
    %331 = vmatpush1.bf16.msra.mxu0 %v307
    %332 = vmatprep.subr.bf16.mxu0 0
    %333 = vmatpush1.bf16.msra.mxu0 0
    %334 = vmatprep.subr.bf16.mxu0 0
    %335 = vmatpush1.bf16.msra.mxu0 0
    %336 = vmatprep.subr.bf16.mxu0 0
    %337 = vmatpush1.bf16.msra.mxu0 0
    %338 = vmatprep.subr.bf16.mxu0 0
    %339 = vmatpush1.bf16.msra.mxu0 0
    %340 = vmatprep.subr.bf16.mxu0 0
    %341 = vmatpush1.bf16.msra.mxu0 0
    %342 = vmatprep.subr.bf16.mxu0 0
    %343 = vmatpush1.bf16.msra.mxu0 0
    %344 = vmatprep.subr.bf16.mxu0 0
    %345 = vmatpush1.bf16.msra.mxu0 0
    %346 = vmatprep.subr.bf16.mxu0 0
    %347 = vmatpush1.bf16.msra.mxu0 0
    %348 = vmatprep.mubr.bf16.mxu0 0
    %349 = vmatmul.mubr.bf16.gmra.mrb[0].mxu0 %v234
    %v350 = vpop.f32.mrb[0].mxu0
    %v351 = vadd.f32 0.0, %v350
    %v352 = vpop.f32.mrb[0].mxu0
    %v353 = vpop.f32.mrb[0].mxu0
    %v354 = vadd.f32 0.0, %v353
    %v355 = vpop.f32.mrb[0].mxu0
    %356 = vmatprep.mubr.bf16.mxu0 0
    %357 = vmatmul.mubr.bf16.gmra.mrb[0].mxu0 %v235
    %v358 = vpop.f32.mrb[0].mxu0
    %v359 = vadd.f32 0.0, %v358
    %v360 = vpop.f32.mrb[0].mxu0
    %v361 = vpop.f32.mrb[0].mxu0
    %v362 = vadd.f32 0.0, %v361
    %v363 = vpop.f32.mrb[0].mxu0
    %364 = vmatprep.mubr.bf16.mxu0 0
    %365 = vmatmul.mubr.bf16.gmra.mrb[0].mxu0 %v236
    %v366 = vpop.f32.mrb[0].mxu0
    %v367 = vadd.f32 0.0, %v366
    %v368 = vpop.f32.mrb[0].mxu0
    %v369 = vpop.f32.mrb[0].mxu0
    %v370 = vadd.f32 0.0, %v369
    %v371 = vpop.f32.mrb[0].mxu0
    %372 = vmatprep.mubr.bf16.mxu0 0
    %373 = vmatmul.mubr.bf16.gmra.mrb[0].mxu0 %v237
    %v374 = vpop.f32.mrb[0].mxu0
    %v375 = vadd.f32 0.0, %v374
    %v376 = vpop.f32.mrb[0].mxu0
    %v377 = vpop.f32.mrb[0].mxu0
    %v378 = vadd.f32 0.0, %v377
    %v379 = vpop.f32.mrb[0].mxu0
    %380 = vmatprep.mubr.bf16.mxu0 0
    %381 = vmatmul.mubr.bf16.gmra.mrb[0].mxu0 %v238
    %v382 = vpop.f32.mrb[0].mxu0
    %v383 = vadd.f32 0.0, %v382
    %v384 = vpop.f32.mrb[0].mxu0
    %v385 = vpop.f32.mrb[0].mxu0
    %v386 = vadd.f32 0.0, %v385
    %v387 = vpop.f32.mrb[0].mxu0
    %388 = vmatprep.mubr.bf16.mxu0 0
    %389 = vmatmul.mubr.bf16.gmra.mrb[0].mxu0 %v239
    %v390 = vpop.f32.mrb[0].mxu0
    %v391 = vadd.f32 0.0, %v390
    %v392 = vpop.f32.mrb[0].mxu0
    %v393 = vpop.f32.mrb[0].mxu0
    %v394 = vadd.f32 0.0, %v393
    %v395 = vpop.f32.mrb[0].mxu0
    %396 = vmatprep.mubr.bf16.mxu0 0
    %397 = vmatmul.mubr.bf16.gmra.mrb[0].mxu0 %v240
    %v398 = vpop.f32.mrb[0].mxu0
    %v399 = vadd.f32 0.0, %v398
    %v400 = vpop.f32.mrb[0].mxu0
    %v401 = vpop.f32.mrb[0].mxu0
    %v402 = vadd.f32 0.0, %v401
    %v403 = vpop.f32.mrb[0].mxu0
    %404 = vmatprep.mubr.bf16.mxu0 0
    %405 = vmatmul.mubr.bf16.gmra.mrb[0].mxu0 %v241
    %v406 = vpop.f32.mrb[0].mxu0
    %v407 = vadd.f32 0.0, %v406
    %v408 = vpop.f32.mrb[0].mxu0
    %v409 = vpop.f32.mrb[0].mxu0
    %v410 = vadd.f32 0.0, %v409
    %v411 = vpop.f32.mrb[0].mxu0
    %412 = vmatprep.mubr.bf16.mxu0 0
    %413 = vmatmul.mubr.bf16.gmra.mrb[0].mxu0 %v242
    %v414 = vpop.f32.mrb[0].mxu0
    %v415 = vadd.f32 0.0, %v414
    %v416 = vpop.f32.mrb[0].mxu0
    %v417 = vpop.f32.mrb[0].mxu0
    %v418 = vadd.f32 0.0, %v417
    %v419 = vpop.f32.mrb[0].mxu0
    %420 = vmatprep.mubr.bf16.mxu0 0
    %421 = vmatmul.mubr.bf16.gmra.mrb[0].mxu0 %v243
    %v422 = vpop.f32.mrb[0].mxu0
    %v423 = vadd.f32 0.0, %v422
    %v424 = vpop.f32.mrb[0].mxu0
    %v425 = vpop.f32.mrb[0].mxu0
    %v426 = vadd.f32 0.0, %v425
    %v427 = vpop.f32.mrb[0].mxu0
    %428 = vmatprep.mubr.bf16.mxu0 0
    %429 = vmatmul.mubr.bf16.gmra.mrb[0].mxu0 %v244
    %v430 = vpop.f32.mrb[0].mxu0
    %v431 = vadd.f32 0.0, %v430
    %v432 = vpop.f32.mrb[0].mxu0
    %v433 = vpop.f32.mrb[0].mxu0
    %v434 = vadd.f32 0.0, %v433
    %v435 = vpop.f32.mrb[0].mxu0
    %436 = vmatprep.mubr.bf16.mxu0 0
    %437 = vmatmul.mubr.bf16.gmra.mrb[0].mxu0 %v245
    %v438 = vpop.f32.mrb[0].mxu0
    %v439 = vadd.f32 0.0, %v438
    %v440 = vpop.f32.mrb[0].mxu0
    %v441 = vpop.f32.mrb[0].mxu0
    %v442 = vadd.f32 0.0, %v441
    %v443 = vpop.f32.mrb[0].mxu0
    %444 = vmatprep.mubr.bf16.mxu0 0
    %445 = vmatmul.mubr.bf16.gmra.mrb[0].mxu0 %v246
    %v446 = vpop.f32.mrb[0].mxu0
    %v447 = vadd.f32 0.0, %v446
    %v448 = vpop.f32.mrb[0].mxu0
    %v449 = vpop.f32.mrb[0].mxu0
    %v450 = vadd.f32 0.0, %v449
    %v451 = vpop.f32.mrb[0].mxu0
    %452 = vmatprep.mubr.bf16.mxu0 0
    %453 = vmatmul.mubr.bf16.gmra.mrb[0].mxu0 %v247
    %v454 = vpop.f32.mrb[0].mxu0
    %v455 = vadd.f32 0.0, %v454
    %v456 = vpop.f32.mrb[0].mxu0
    %v457 = vpop.f32.mrb[0].mxu0
    %v458 = vadd.f32 0.0, %v457
    %v459 = vpop.f32.mrb[0].mxu0
    %460 = vmatprep.mubr.bf16.mxu0 0
    %461 = vmatmul.mubr.bf16.gmra.mrb[0].mxu0 %v248
    %v462 = vpop.f32.mrb[0].mxu0
    %v463 = vadd.f32 0.0, %v462
    %v464 = vpop.f32.mrb[0].mxu0
    %v465 = vpop.f32.mrb[0].mxu0
    %v466 = vadd.f32 0.0, %v465
    %v467 = vpop.f32.mrb[0].mxu0
    %468 = vmatprep.mubr.bf16.mxu0 0
    %469 = vmatmul.mubr.bf16.gmra.mrb[0].mxu0 %v249
    %v470 = vpop.f32.mrb[0].mxu0
    %v471 = vadd.f32 0.0, %v470
    %v472 = vpop.f32.mrb[0].mxu0
    %v473 = vpop.f32.mrb[0].mxu0
    %v474 = vadd.f32 0.0, %v473
    %v475 = vpop.f32.mrb[0].mxu0
    %476 = vmatprep.mubr.bf16.mxu0 0
    %477 = vmatmul.mubr.bf16.gmra.mrb[0].mxu0 %v250
    %v478 = vpop.f32.mrb[0].mxu0
    %v479 = vadd.f32 0.0, %v478
    %v480 = vpop.f32.mrb[0].mxu0
    %v481 = vpop.f32.mrb[0].mxu0
    %v482 = vadd.f32 0.0, %v481
    %v483 = vpop.f32.mrb[0].mxu0
    %484 = vdwg.mxu0
    %v485 = vadd.f32 %v82, %v351
    %v486 = vadd.f32 %v83, %v354
    %v487 = vadd.f32 %v84, %v359
    %v488 = vadd.f32 %v85, %v362
    %v489 = vadd.f32 %v86, %v367
    %v490 = vadd.f32 %v87, %v370
    %v491 = vadd.f32 %v88, %v375
    %v492 = vadd.f32 %v89, %v378
    %v493 = vadd.f32 %v90, %v383
    %v494 = vadd.f32 %v91, %v386
    %v495 = vadd.f32 %v92, %v391
    %v496 = vadd.f32 %v93, %v394
    %v497 = vadd.f32 %v94, %v399
    %v498 = vadd.f32 %v95, %v402
    %v499 = vadd.f32 %v96, %v407
    %v500 = vadd.f32 %v97, %v410
    %v501 = vadd.f32 %v98, %v415
    %v502 = vadd.f32 %v99, %v418
    %v503 = vadd.f32 %v100, %v423
    %v504 = vadd.f32 %v101, %v426
    %v505 = vadd.f32 %v102, %v431
    %v506 = vadd.f32 %v103, %v434
    %v507 = vadd.f32 %v104, %v439
    %v508 = vadd.f32 %v105, %v442
    %v509 = vadd.f32 %v106, %v447
    %v510 = vadd.f32 %v107, %v450
    %v511 = vadd.f32 %v108, %v455
    %v512 = vadd.f32 %v109, %v458
    %v513 = vadd.f32 %v110, %v463
    %v514 = vadd.f32 %v111, %v466
    %v515 = vadd.f32 %v112, %v471
    %v516 = vadd.f32 %v113, %v474
    %v517 = vadd.f32 %v114, %v479
    %v518 = vadd.f32 %v115, %v482
    %519 = vst [vmem:[#allocation2] sm:$0xff] %v485
    %520 = vst [vmem:[#allocation2 + $0x8] sm:$0xff] %v486
    %521 = vst [vmem:[#allocation2 + $0x10] sm:$0xff] %v487
    %522 = vst [vmem:[#allocation2 + $0x18] sm:$0xff] %v488
    %523 = vst [vmem:[#allocation2 + $0x20] sm:$0xff] %v489
    %524 = vst [vmem:[#allocation2 + $0x28] sm:$0xff] %v490
    %525 = vst [vmem:[#allocation2 + $0x30] sm:$0xff] %v491
    %526 = vst [vmem:[#allocation2 + $0x38] sm:$0xff] %v492
    %527 = vst [vmem:[#allocation2 + $0x40] sm:$0xff] %v493
    %528 = vst [vmem:[#allocation2 + $0x48] sm:$0xff] %v494
    %529 = vst [vmem:[#allocation2 + $0x50] sm:$0xff] %v495
    %530 = vst [vmem:[#allocation2 + $0x58] sm:$0xff] %v496
    %531 = vst [vmem:[#allocation2 + $0x60] sm:$0xff] %v497
    %532 = vst [vmem:[#allocation2 + $0x68] sm:$0xff] %v498
    %533 = vst [vmem:[#allocation2 + $0x70] sm:$0xff] %v499
    %534 = vst [vmem:[#allocation2 + $0x78] sm:$0xff] %v500
    %535 = vst [vmem:[#allocation2 + $0x80] sm:$0xff] %v501
    %536 = vst [vmem:[#allocation2 + $0x88] sm:$0xff] %v502
    %537 = vst [vmem:[#allocation2 + $0x90] sm:$0xff] %v503
    %538 = vst [vmem:[#allocation2 + $0x98] sm:$0xff] %v504
    %539 = vst [vmem:[#allocation2 + $0xa0] sm:$0xff] %v505
    %540 = vst [vmem:[#allocation2 + $0xa8] sm:$0xff] %v506
    %541 = vst [vmem:[#allocation2 + $0xb0] sm:$0xff] %v507
    %542 = vst [vmem:[#allocation2 + $0xb8] sm:$0xff] %v508
    %543 = vst [vmem:[#allocation2 + $0xc0] sm:$0xff] %v509
    %544 = vst [vmem:[#allocation2 + $0xc8] sm:$0xff] %v510
    %545 = vst [vmem:[#allocation2 + $0xd0] sm:$0xff] %v511
    %546 = vst [vmem:[#allocation2 + $0xd8] sm:$0xff] %v512
    %547 = vst [vmem:[#allocation2 + $0xe0] sm:$0xff] %v513
    %548 = vst [vmem:[#allocation2 + $0xe8] sm:$0xff] %v514
    %549 = vst [vmem:[#allocation2 + $0xf0] sm:$0xff] %v515
    %550 = vst [vmem:[#allocation2 + $0xf8] sm:$0xff] %v516
    %551 = vst [vmem:[#allocation2 + $0x100] sm:$0xff] %v517
    %552 = vst [vmem:[#allocation2 + $0x108] sm:$0xff] %v518
    // Predicated region
    $region26: #{tpu_custom_call.1} parent=1 // pred_check
      %p553 = pneg %p44
    $region27: #{tpu_custom_call.1} parent=1 // pred_check_branch
      %555 = sbr.rel (%p553) target = $region29
    $region28: #{tpu_custom_call.1} parent=1 // pred_region
      %v556 = vld [vmem:[#allocation2] sm:$0xff]
      %v557 = vld [vmem:[#allocation2 + $0x8] sm:$0xff]
      %v558 = vld [vmem:[#allocation2 + $0x10] sm:$0xff]
      %v559 = vld [vmem:[#allocation2 + $0x18] sm:$0xff]
      %v560 = vld [vmem:[#allocation2 + $0x20] sm:$0xff]
      %v561 = vld [vmem:[#allocation2 + $0x28] sm:$0xff]
      %v562 = vld [vmem:[#allocation2 + $0x30] sm:$0xff]
      %v563 = vld [vmem:[#allocation2 + $0x38] sm:$0xff]
      %v564 = vld [vmem:[#allocation2 + $0x40] sm:$0xff]
      %v565 = vld [vmem:[#allocation2 + $0x48] sm:$0xff]
      %v566 = vld [vmem:[#allocation2 + $0x50] sm:$0xff]
      %v567 = vld [vmem:[#allocation2 + $0x58] sm:$0xff]
      %v568 = vld [vmem:[#allocation2 + $0x60] sm:$0xff]
      %v569 = vld [vmem:[#allocation2 + $0x68] sm:$0xff]
      %v570 = vld [vmem:[#allocation2 + $0x70] sm:$0xff]
      %v571 = vld [vmem:[#allocation2 + $0x78] sm:$0xff]
      %v572 = vld [vmem:[#allocation2 + $0x80] sm:$0xff]
      %v573 = vld [vmem:[#allocation2 + $0x88] sm:$0xff]
      %v574 = vld [vmem:[#allocation2 + $0x90] sm:$0xff]
      %v575 = vld [vmem:[#allocation2 + $0x98] sm:$0xff]
      %v576 = vld [vmem:[#allocation2 + $0xa0] sm:$0xff]
      %v577 = vld [vmem:[#allocation2 + $0xa8] sm:$0xff]
      %v578 = vld [vmem:[#allocation2 + $0xb0] sm:$0xff]
      %v579 = vld [vmem:[#allocation2 + $0xb8] sm:$0xff]
      %v580 = vld [vmem:[#allocation2 + $0xc0] sm:$0xff]
      %v581 = vld [vmem:[#allocation2 + $0xc8] sm:$0xff]
      %v582 = vld [vmem:[#allocation2 + $0xd0] sm:$0xff]
      %v583 = vld [vmem:[#allocation2 + $0xd8] sm:$0xff]
      %v584 = vld [vmem:[#allocation2 + $0xe0] sm:$0xff]
      %v585 = vld [vmem:[#allocation2 + $0xe8] sm:$0xff]
      %v586 = vld [vmem:[#allocation2 + $0xf0] sm:$0xff]
      %v587 = vld [vmem:[#allocation2 + $0xf8] sm:$0xff]
      %v588 = vld [vmem:[#allocation2 + $0x100] sm:$0xff]
      %v589 = vld [vmem:[#allocation2 + $0x108] sm:$0xff]
      %v590 = vld [vmem:[%s2] sm:$0x1]
      %v592 = vlaneseq
      %v593 = vshrl.u32 %v592, 7
      %v594 = vsub.s32 0, %v593
      %v595 = vrot.slane %v590, %v594
      %v597 = vadd.f32 %v556, %v595
      %v598 = vadd.f32 %v557, %v595
      %v599 = vadd.f32 %v558, %v595
      %v600 = vadd.f32 %v559, %v595
      %v601 = vadd.f32 %v560, %v595
      %v602 = vadd.f32 %v561, %v595
      %v603 = vadd.f32 %v562, %v595
      %v604 = vadd.f32 %v563, %v595
      %v605 = vadd.f32 %v564, %v595
      %v606 = vadd.f32 %v565, %v595
      %v607 = vadd.f32 %v566, %v595
      %v608 = vadd.f32 %v567, %v595
      %v609 = vadd.f32 %v568, %v595
      %v610 = vadd.f32 %v569, %v595
      %v611 = vadd.f32 %v570, %v595
      %v612 = vadd.f32 %v571, %v595
      %v613 = vadd.f32 %v572, %v595
      %v614 = vadd.f32 %v573, %v595
      %v615 = vadd.f32 %v574, %v595
      %v616 = vadd.f32 %v575, %v595
      %v617 = vadd.f32 %v576, %v595
      %v618 = vadd.f32 %v577, %v595
      %v619 = vadd.f32 %v578, %v595
      %v620 = vadd.f32 %v579, %v595
      %v621 = vadd.f32 %v580, %v595
      %v622 = vadd.f32 %v581, %v595
      %v623 = vadd.f32 %v582, %v595
      %v624 = vadd.f32 %v583, %v595
      %v625 = vadd.f32 %v584, %v595
      %v626 = vadd.f32 %v585, %v595
      %v627 = vadd.f32 %v586, %v595
      %v628 = vadd.f32 %v587, %v595
      %v629 = vadd.f32 %v588, %v595
      %v630 = vadd.f32 %v589, %v595
      %v631 = vmax.f32 %v597, 0.0
      %v632 = vmax.f32 %v598, 0.0
      %v633 = vmax.f32 %v599, 0.0
      %v634 = vmax.f32 %v600, 0.0
      %v635 = vmax.f32 %v601, 0.0
      %v636 = vmax.f32 %v602, 0.0
      %v637 = vmax.f32 %v603, 0.0
      %v638 = vmax.f32 %v604, 0.0
      %v639 = vmax.f32 %v605, 0.0
      %v640 = vmax.f32 %v606, 0.0
      %v641 = vmax.f32 %v607, 0.0
      %v642 = vmax.f32 %v608, 0.0
      %v643 = vmax.f32 %v609, 0.0
      %v644 = vmax.f32 %v610, 0.0
      %v645 = vmax.f32 %v611, 0.0
      %v646 = vmax.f32 %v612, 0.0
      %v647 = vmax.f32 %v613, 0.0
      %v648 = vmax.f32 %v614, 0.0
      %v649 = vmax.f32 %v615, 0.0
      %v650 = vmax.f32 %v616, 0.0
      %v651 = vmax.f32 %v617, 0.0
      %v652 = vmax.f32 %v618, 0.0
      %v653 = vmax.f32 %v619, 0.0
      %v654 = vmax.f32 %v620, 0.0
      %v655 = vmax.f32 %v621, 0.0
      %v656 = vmax.f32 %v622, 0.0
      %v657 = vmax.f32 %v623, 0.0
      %v658 = vmax.f32 %v624, 0.0
      %v659 = vmax.f32 %v625, 0.0
      %v660 = vmax.f32 %v626, 0.0
      %v661 = vmax.f32 %v627, 0.0
      %v662 = vmax.f32 %v628, 0.0
      %v663 = vmax.f32 %v629, 0.0
      %v664 = vmax.f32 %v630, 0.0
      %665 = vst [vmem:[#allocation8] sm:$0xff] %v631
      %666 = vst [vmem:[#allocation8 + $0x8] sm:$0xff] %v632
      %667 = vst [vmem:[#allocation8 + $0x10] sm:$0xff] %v633
      %668 = vst [vmem:[#allocation8 + $0x18] sm:$0xff] %v634
      %669 = vst [vmem:[#allocation8 + $0x20] sm:$0xff] %v635
      %670 = vst [vmem:[#allocation8 + $0x28] sm:$0xff] %v636
      %671 = vst [vmem:[#allocation8 + $0x30] sm:$0xff] %v637
      %672 = vst [vmem:[#allocation8 + $0x38] sm:$0xff] %v638
      %673 = vst [vmem:[#allocation8 + $0x40] sm:$0xff] %v639
      %674 = vst [vmem:[#allocation8 + $0x48] sm:$0xff] %v640
      %675 = vst [vmem:[#allocation8 + $0x50] sm:$0xff] %v641
      %676 = vst [vmem:[#allocation8 + $0x58] sm:$0xff] %v642
      %677 = vst [vmem:[#allocation8 + $0x60] sm:$0xff] %v643
      %678 = vst [vmem:[#allocation8 + $0x68] sm:$0xff] %v644
      %679 = vst [vmem:[#allocation8 + $0x70] sm:$0xff] %v645
      %680 = vst [vmem:[#allocation8 + $0x78] sm:$0xff] %v646
      %681 = vst [vmem:[#allocation8 + $0x80] sm:$0xff] %v647
      %682 = vst [vmem:[#allocation8 + $0x88] sm:$0xff] %v648
      %683 = vst [vmem:[#allocation8 + $0x90] sm:$0xff] %v649
      %684 = vst [vmem:[#allocation8 + $0x98] sm:$0xff] %v650
      %685 = vst [vmem:[#allocation8 + $0xa0] sm:$0xff] %v651
      %686 = vst [vmem:[#allocation8 + $0xa8] sm:$0xff] %v652
      %687 = vst [vmem:[#allocation8 + $0xb0] sm:$0xff] %v653
      %688 = vst [vmem:[#allocation8 + $0xb8] sm:$0xff] %v654
      %689 = vst [vmem:[#allocation8 + $0xc0] sm:$0xff] %v655
      %690 = vst [vmem:[#allocation8 + $0xc8] sm:$0xff] %v656
      %691 = vst [vmem:[#allocation8 + $0xd0] sm:$0xff] %v657
      %692 = vst [vmem:[#allocation8 + $0xd8] sm:$0xff] %v658
      %693 = vst [vmem:[#allocation8 + $0xe0] sm:$0xff] %v659
      %694 = vst [vmem:[#allocation8 + $0xe8] sm:$0xff] %v660
      %695 = vst [vmem:[#allocation8 + $0xf0] sm:$0xff] %v661
      %696 = vst [vmem:[#allocation8 + $0xf8] sm:$0xff] %v662
      %697 = vst [vmem:[#allocation8 + $0x100] sm:$0xff] %v663
      %698 = vst [vmem:[#allocation8 + $0x108] sm:$0xff] %v664
    $region29: #{tpu_custom_call.1} parent=1 // pred_fallthru
      _
    // Predicated region
    $region30: #{tpu_custom_call.1} parent=1 // pred_check
      _
    $region31: #{tpu_custom_call.1} parent=1 // pred_check_branch
      %700 = sbr.rel (0) target = $region33
    $region32: #{tpu_custom_call.1} parent=1 // pred_region
      %s702 = ssub.s32 4352, 4352
      %703 = vsyncadd [#allocation5], %s702
      %s704 = sshll.u32 [#allocation8], 4
      %s705 = int_to_ptr.vmem [resolvable:$true] %s704
      %710 = dma.vmem_to_hbm [thread:$0]  %s705, 4352, %s3, [#allocation5], 128, 128, 8
    $region33: #{tpu_custom_call.1} parent=1 // pred_fallthru
      _
    // Predicated region
    $region34: #{tpu_custom_call.1} parent=1 // pred_check
      _
    $region35: #{tpu_custom_call.1} parent=1 // pred_check_branch
      %712 = sbr.rel (0) target = $region37
    $region36: #{tpu_custom_call.1} parent=1 // pred_region
      %713 = dma.done [#allocation5], 4352
    $region37: #{tpu_custom_call.1} parent=1 // pred_fallthru
      _
    %714 = vsyncpa [#allocation4], 1
    %715 = vsyncpa [#allocation7], 1
    %716 = vsyncpa [#allocation5], 1

</llo_original>
